<compile_context>
chip_gen: v5e
topology: v5e:2x2
jax: 0.10.0
libtpu: 0.0.40
codegen_flags: <defaults>
</compile_context>

<pallas_src>
import jax
import jax.numpy as jnp
from jax.experimental import pallas as pl
from jax.experimental.pallas import tpu as pltpu


def _split_kernel(x_ref, even_ref, odd_ref):
    """x_ref: [B, tile, 2*D]  ->  even_ref, odd_ref: [B, tile, D]."""
    d = even_ref.shape[-1]
    x = x_ref[...]
    even_ref[...] = x[:, :, :d]       # lanes 0..D-1   == time steps 2t
    odd_ref[...] = x[:, :, d:]        # lanes D..2D-1  == time steps 2t+1


def splitting(x, *, max_rows_per_block=1024):
    """Returns (even, odd) parts of x over the time axis, matching Splitting.forward."""
    B, T, D = x.shape
    padded = (T % 2) != 0
    if padded:
        # PyTorch keeps the extra (last) step in the even part; pad one zero row and
        # trim the odd output below.
        x = jnp.pad(x, ((0, 0), (0, 1), (0, 0)))
    half = x.shape[1] // 2

    # Free (contiguous) reshape: row t of xr holds [x[2t], x[2t+1]] along lanes.
    xr = x.reshape(B, half, 2 * D)

    # Tile the time axis only if it is large; keep the whole batch in each block.
    tile = half
    if half > max_rows_per_block:
        start = (max_rows_per_block // 8) * 8
        for cand in range(start, 0, -8):
            if half % cand == 0:
                tile = cand
                break
    grid = (half // tile,)

    in_spec = pl.BlockSpec((B, tile, 2 * D), lambda i: (0, i, 0))
    out_spec = pl.BlockSpec((B, tile, D), lambda i: (0, i, 0))

    even, odd = pl.pallas_call(
        _split_kernel,
        out_shape=(jax.ShapeDtypeStruct((B, half, D), x.dtype),
                   jax.ShapeDtypeStruct((B, half, D), x.dtype)),
        grid_spec=pltpu.PrefetchScalarGridSpec(
            num_scalar_prefetch=0,
            grid=grid,
            in_specs=[in_spec],
            out_specs=(out_spec, out_spec),
        ),
        compiler_params=pltpu.CompilerParams(
            dimension_semantics=("parallel",)),
    )(xr)

    if padded:
        odd = odd[:, : T // 2, :]
    return even, odd


if __name__ == "__main__":
    key = jax.random.PRNGKey(0)
    B, T, D = 2, 16, 16
    x = jax.random.normal(key, (B, T, D), dtype=jnp.float32)

    even, odd = jax.block_until_ready(splitting(x))

    ref_even = x[:, 0::2, :]
    ref_odd = x[:, 1::2, :]
    assert even.shape == ref_even.shape, (even.shape, ref_even.shape)
    assert odd.shape == ref_odd.shape, (odd.shape, ref_odd.shape)
    assert bool(jnp.array_equal(even, ref_even))
    assert bool(jnp.array_equal(odd, ref_odd))

    # Odd-length time axis: PyTorch keeps the extra time step in the even part.
    x2 = jax.random.normal(jax.random.fold_in(key, 1), (B, T - 1, D), dtype=jnp.float32)
    even2, odd2 = jax.block_until_ready(splitting(x2))
    assert bool(jnp.array_equal(even2, x2[:, 0::2, :]))
    assert bool(jnp.array_equal(odd2, x2[:, 1::2, :]))

    print("KERNEL_OK")
</pallas_src>

<mosaic_0001>
module attributes {stable_mosaic.version = 11 : i64} {
  func.func @_split_kernel(%arg0: i32, %arg1: memref<2x8x32xf32, #tpu.memory_space<vmem>>, %arg2: memref<2x8x16xf32, #tpu.memory_space<vmem>>, %arg3: memref<2x8x16xf32, #tpu.memory_space<vmem>>) attributes {dimension_semantics = [#tpu.dimension_semantics<parallel>], iteration_bounds = array<i64: 1>, scalar_prefetch = 0 : i64, scratch_operands = 0 : i64, tpu.core_type = #tpu.core_type<tc>, window_params = [{transform_indices = @transform_0, window_bounds = array<i64: 2, 8, 32>}, {transform_indices = @transform_1, window_bounds = array<i64: 2, 8, 16>}, {transform_indices = @transform_2, window_bounds = array<i64: 2, 8, 16>}]} {
    %c0 = arith.constant 0 : index
    %c0_0 = arith.constant 0 : index
    %c0_1 = arith.constant 0 : index
    %0 = vector.load %arg1[%c0, %c0_0, %c0_1] : memref<2x8x32xf32, #tpu.memory_space<vmem>>, vector<2x8x32xf32>
    %1 = vector.extract_strided_slice %0 {offsets = [0, 0, 0], sizes = [2, 8, 16], strides = [1, 1, 1]} : vector<2x8x32xf32> to vector<2x8x16xf32>
    %c0_2 = arith.constant 0 : index
    %c0_3 = arith.constant 0 : index
    %c0_4 = arith.constant 0 : index
    %2 = vector.load %arg2[%c0_2, %c0_3, %c0_4] : memref<2x8x16xf32, #tpu.memory_space<vmem>>, vector<2x8x16xf32>
    tpu.vector_store %arg2[%c0_2, %c0_3, %c0_4], %1 {strides = array<i32>} : memref<2x8x16xf32, #tpu.memory_space<vmem>>, vector<2x8x16xf32>,
    %3 = vector.extract_strided_slice %0 {offsets = [0, 0, 16], sizes = [2, 8, 16], strides = [1, 1, 1]} : vector<2x8x32xf32> to vector<2x8x16xf32>
    %c0_5 = arith.constant 0 : index
    %c0_6 = arith.constant 0 : index
    %c0_7 = arith.constant 0 : index
    %4 = vector.load %arg3[%c0_5, %c0_6, %c0_7] : memref<2x8x16xf32, #tpu.memory_space<vmem>>, vector<2x8x16xf32>
    tpu.vector_store %arg3[%c0_5, %c0_6, %c0_7], %3 {strides = array<i32>} : memref<2x8x16xf32, #tpu.memory_space<vmem>>, vector<2x8x16xf32>,
    return
  }
  func.func @transform_0(%arg0: i32) -> (i32, i32, i32) {
    %c0_i32 = arith.constant 0 : i32
    %c0_i32_0 = arith.constant 0 : i32
    %c0_i32_1 = arith.constant 0 : i32
    return %c0_i32, %arg0, %c0_i32_0 : i32, i32, i32
  }
  func.func @transform_1(%arg0: i32) -> (i32, i32, i32) {
    %c0_i32 = arith.constant 0 : i32
    %c0_i32_0 = arith.constant 0 : i32
    %c0_i32_1 = arith.constant 0 : i32
    return %c0_i32, %arg0, %c0_i32_0 : i32, i32, i32
  }
  func.func @transform_2(%arg0: i32) -> (i32, i32, i32) {
    %c0_i32 = arith.constant 0 : i32
    %c0_i32_0 = arith.constant 0 : i32
    %c0_i32_1 = arith.constant 0 : i32
    return %c0_i32, %arg0, %c0_i32_0 : i32, i32, i32
  }
}

</mosaic_0001>

<llo_original>
// kernel: tpu_custom_call.1
$region0: #{tpu_custom_call.1}
  #allocation0 [shape = 'u32[]', space=smem, size = 0x4, offset = 0x4, fixed_abs, tag = 'smem constant byte address 0x4 - core index']
  #allocation1 [shape = 'u32[72,128]{1,0:T(1,128)}', space=vmem, size = 0x9000, scoped, tag = 'internal scratch']
  %s0 = inlined_call_operand.hbm [shape: f32[2,8,32], index: 0, kind: input, shape index: {}]
  %s1 = inlined_call_operand.hbm [shape: f32[2,8,16], index: 1, kind: output, shape index: {0}]
  %s2 = inlined_call_operand.hbm [shape: f32[2,8,16], index: 2, kind: output, shape index: {1}]
  %3 = xla_tuple %s1, %s2
  %s4 = sld [smem:[#allocation0]]
  $region26: #{tpu_custom_call.1} parent=0
    _
  %s6 = ssub.s32 1, %s4
  %s7 = scalar_select 0, %s6, %s4
  $region1: #{tpu_custom_call.1} parent=0
    #allocation2 [shape = 'u8[8192]{0}', space=vmem, size = 0x2000, scoped, tag = 'input window, operand 0, single buffered']
    #allocation3 [shape = 's32[1]{0}', space=sflag, size = 0x4, scoped, tag = 'scoped memory for tpu_custom_call.1']
    #allocation4 [shape = 's32[1]{0}', space=sflag, size = 0x4, scoped, tag = 'scoped memory for tpu_custom_call.1']
    #allocation5 [shape = 'u8[8192]{0}', space=vmem, size = 0x2000, scoped, tag = 'output window, operand 0, single buffered']
    #allocation6 [shape = 'u8[8192]{0}', space=vmem, size = 0x2000, scoped, tag = 'output window, operand 1, single buffered']
    #allocation7 [shape = 's32[1]{0}', space=sflag, size = 0x4, scoped, tag = 'scoped memory for tpu_custom_call.1']
    %8 = vsyncpa [#allocation3], 0
    %9 = vsyncpa [#allocation4], 0
    %10 = vsyncpa [#allocation7], 0
    // Predicated region
    $region2: #{tpu_custom_call.1} parent=1 // pred_check
      _
    $region3: #{tpu_custom_call.1} parent=1 // pred_check_branch
      %12 = sbr.rel (0) target = $region5
    $region4: #{tpu_custom_call.1} parent=1 // pred_region
      %14 = vsyncadd [#allocation3], 0
      %s15 = sshll.u32 %s0, 4
      %s16 = int_to_ptr.hbm [resolvable:$true] %s15
      %s17 = sshll.u32 [#allocation2], 4
      %s18 = int_to_ptr.vmem [resolvable:$true] %s17
      %23 = dma.hbm_to_vmem [thread:$0]  %s16, 256, %s18, [#allocation3], 128, 128, 8
    $region5: #{tpu_custom_call.1} parent=1 // pred_fallthru
      _
    // Predicated region
    $region6: #{tpu_custom_call.1} parent=1 // pred_check
      _
    $region7: #{tpu_custom_call.1} parent=1 // pred_check_branch
      %25 = sbr.rel (0) target = $region9
    $region8: #{tpu_custom_call.1} parent=1 // pred_region
      %27 = dma.done [#allocation3], 256
    $region9: #{tpu_custom_call.1} parent=1 // pred_fallthru
      _
    %v28 = vld [vmem:[#allocation2] sm:$0xff]
    %v29 = vld [vmem:[#allocation2 + $0x8] sm:$0xff]
    %vm30 = vcmask 130048
    %31 = vst.msk [vmem:[#allocation5] sm:$0xff] %vm30, %v28
    %32 = vst.msk [vmem:[#allocation5 + $0x8] sm:$0xff] %vm30, %v29
    %35 = vrot.lane.b32.xlu0 %v28, 112
    %v36 = vpop.permute.xlu0 %35
    %37 = vrot.lane.b32.xlu0 %v29, 112
    %v38 = vpop.permute.xlu0 %37
    %41 = vst.msk [vmem:[#allocation6] sm:$0xff] %vm30, %v36
    %42 = vst.msk [vmem:[#allocation6 + $0x8] sm:$0xff] %vm30, %v38
    // Predicated region
    $region10: #{tpu_custom_call.1} parent=1 // pred_check
      _
    $region11: #{tpu_custom_call.1} parent=1 // pred_check_branch
      %44 = sbr.rel (0) target = $region13
    $region12: #{tpu_custom_call.1} parent=1 // pred_region
      %46 = vsyncadd [#allocation4], 0
      %s47 = sshll.u32 [#allocation5], 4
      %s48 = int_to_ptr.vmem [resolvable:$true] %s47
      %s49 = sshll.u32 %s1, 4
      %s50 = int_to_ptr.hbm [resolvable:$true] %s49
      %55 = dma.vmem_to_hbm [thread:$0]  %s48, 256, %s50, [#allocation4], 128, 128, 8
    $region13: #{tpu_custom_call.1} parent=1 // pred_fallthru
      _
    // Predicated region
    $region14: #{tpu_custom_call.1} parent=1 // pred_check
      _
    $region15: #{tpu_custom_call.1} parent=1 // pred_check_branch
      %57 = sbr.rel (0) target = $region17
    $region16: #{tpu_custom_call.1} parent=1 // pred_region
      %59 = vsyncadd [#allocation7], 0
      %s60 = sshll.u32 [#allocation6], 4
      %s61 = int_to_ptr.vmem [resolvable:$true] %s60
      %s62 = sshll.u32 %s2, 4
      %s63 = int_to_ptr.hbm [resolvable:$true] %s62
      %68 = dma.vmem_to_hbm [thread:$0]  %s61, 256, %s63, [#allocation7], 128, 128, 8
    $region17: #{tpu_custom_call.1} parent=1 // pred_fallthru
      _
    // Predicated region
    $region18: #{tpu_custom_call.1} parent=1 // pred_check
      _
    $region19: #{tpu_custom_call.1} parent=1 // pred_check_branch
      %70 = sbr.rel (0) target = $region21
    $region20: #{tpu_custom_call.1} parent=1 // pred_region
      %72 = dma.done [#allocation4], 256
    $region21: #{tpu_custom_call.1} parent=1 // pred_fallthru
      _
    // Predicated region
    $region22: #{tpu_custom_call.1} parent=1 // pred_check
      _
    $region23: #{tpu_custom_call.1} parent=1 // pred_check_branch
      %74 = sbr.rel (0) target = $region25
    $region24: #{tpu_custom_call.1} parent=1 // pred_region
      %76 = dma.done [#allocation7], 256
    $region25: #{tpu_custom_call.1} parent=1 // pred_fallthru
      _
    %77 = vsyncpa [#allocation3], 1
    %78 = vsyncpa [#allocation4], 1
    %79 = vsyncpa [#allocation7], 1

</llo_original>
